<compile_context>
chip_gen: v7x
topology: tpu7x:2x2x1
jax: 0.10.0
libtpu: 0.0.40
codegen_flags: <defaults>
</compile_context>

<pallas_src>
import functools

import jax
import jax.numpy as jnp
from jax.experimental import pallas as pl
from jax.experimental.pallas import tpu as pltpu

EPS = 1e-5


def dcp_kernel(x_ref, gamma_ref, beta_ref, w_ref, b_ref, y_ref,
               loss_ref, pi_ref,
               rowsum_ref, rowsq_ref,
               *, num_class, hw, n_batch):
    t = pl.program_id(0)

    @pl.when(t == 0)
    def _init():
        rowsum_ref[...] = jnp.zeros_like(rowsum_ref)
        rowsq_ref[...] = jnp.zeros_like(rowsq_ref)

    # ---- one-pass accumulation over this HW tile (no normalized tensor) ----
    x = x_ref[...]                                    # (N, C, THW) f32
    rowsum_ref[...] += jnp.sum(x, axis=-1)            # (N, C)
    rowsq_ref[...] += jnp.sum(x * x, axis=-1)         # (N, C)

    @pl.when(t == pl.num_programs(0) - 1)
    def _finalize():
        rowsum = rowsum_ref[...]                      # (N, C)
        rowsq = rowsq_ref[...]                        # (N, C)
        inv_hw = jnp.float32(1.0 / hw)
        inv_nhw = jnp.float32(1.0 / (n_batch * hw))

        pooled = rowsum * inv_hw                                      # mean over HW
        mu = jnp.sum(rowsum, axis=0, keepdims=True) * inv_nhw         # (1, C)
        ex2 = jnp.sum(rowsq, axis=0, keepdims=True) * inv_nhw         # (1, C)
        var = jnp.maximum(ex2 - mu * mu, 0.0)                         # biased var, clamped
        scale = gamma_ref[...] * jax.lax.rsqrt(var + EPS)             # (1, C)
        shift = beta_ref[...] - scale * mu                            # (1, C)
        oi = pooled * scale + shift                                   # (N, C) pooled BN output

        # Tiny classifier: issued exactly once (final grid step only).
        logits = jnp.dot(oi, w_ref[...],
                         preferred_element_type=jnp.float32) + b_ref[...]   # (N, KP)
        pi_ref[...] = logits                                          # lane-dense store

        # ---- CrossEntropyLoss over the first num_class (real) columns ----
        kp = logits.shape[-1]
        col = jax.lax.broadcasted_iota(jnp.int32, (n_batch, kp), 1)
        valid = col < num_class
        lm = jnp.where(valid, logits, jnp.float32(-1e30))
        m = jnp.max(lm, axis=-1, keepdims=True)
        z = lm - m
        lse = jnp.log(jnp.sum(jnp.exp(z), axis=-1, keepdims=True))
        logp = z - lse                                                # (N, KP)
        onehot = (col == y_ref[...]).astype(jnp.float32)              # y_ref: (N, 1) int32
        loss_ref[0, 0] = -jnp.sum(onehot * logp) * jnp.float32(1.0 / n_batch)


def _pick_hw_tile(hw, rows):
    """Largest lane-aligned HW tile that divides HW, keeps >=2 grid steps and
    keeps each x block <= ~4 MiB (safe for v7x's smaller VMEM)."""
    if hw % 128 != 0:
        return hw  # single full-width block; still correct
    t = 128
    while (t * 2 <= 2048
           and hw % (t * 2) == 0
           and hw // (t * 2) >= 2
           and rows * (t * 2) * 4 <= 4 * 1024 * 1024):
        t *= 2
    return t


def dcp_classifier_forward(feats_nchw, y, gamma, beta, w, b, num_class):
    """feats_nchw: (N, C, H, W) f32; y: (N,) int labels; w: (C, num_class); b: (num_class,)."""
    N, C, H, W = feats_nchw.shape
    HW = H * W
    KP = max(128, ((num_class + 127) // 128) * 128)   # lane-dense logits width
    thw = _pick_hw_tile(HW, N * C)
    n_tiles = HW // thw

    x = feats_nchw.reshape(N, C, HW).astype(jnp.float32)
    gamma2 = gamma.reshape(1, C).astype(jnp.float32)
    beta2 = beta.reshape(1, C).astype(jnp.float32)
    w_pad = jnp.zeros((C, KP), jnp.float32).at[:, :num_class].set(w.astype(jnp.float32))
    b_pad = jnp.zeros((1, KP), jnp.float32).at[0, :num_class].set(b.astype(jnp.float32))
    y2 = y.reshape(N, 1).astype(jnp.int32)

    kernel = functools.partial(dcp_kernel, num_class=num_class, hw=HW, n_batch=N)

    x_block_bytes = N * C * thw * 4
    vmem_limit = min(48 * 1024 * 1024,
                     max(8 * 1024 * 1024, 4 * x_block_bytes + (2 << 20)))

    grid_spec = pltpu.PrefetchScalarGridSpec(
        num_scalar_prefetch=0,
        grid=(n_tiles,),
        in_specs=[
            pl.BlockSpec((N, C, thw), lambda t: (0, 0, t)),   # x tiles over HW
            pl.BlockSpec((1, C), lambda t: (0, 0)),           # gamma
            pl.BlockSpec((1, C), lambda t: (0, 0)),           # beta
            pl.BlockSpec((C, KP), lambda t: (0, 0)),          # padded linear weight
            pl.BlockSpec((1, KP), lambda t: (0, 0)),          # padded linear bias
            pl.BlockSpec((N, 1), lambda t: (0, 0)),           # labels (int32)
        ],
        out_specs=(
            pl.BlockSpec((1, 1), lambda t: (0, 0),
                         memory_space=pltpu.MemorySpace.SMEM),  # loss scalar
            pl.BlockSpec((N, KP), lambda t: (0, 0)),            # padded logits
        ),
        scratch_shapes=[
            pltpu.VMEM((N, C), jnp.float32),   # per-(n,c) sum accumulator
            pltpu.VMEM((N, C), jnp.float32),   # per-(n,c) sum-of-squares accumulator
        ],
    )

    loss, pi = pl.pallas_call(
        kernel,
        out_shape=(
            jax.ShapeDtypeStruct((1, 1), jnp.float32),
            jax.ShapeDtypeStruct((N, KP), jnp.float32),
        ),
        grid_spec=grid_spec,
        compiler_params=pltpu.CompilerParams(
            dimension_semantics=("arbitrary",),   # HW is a reduction axis
            vmem_limit_bytes=vmem_limit,
        ),
    )(x, gamma2, beta2, w_pad, b_pad, y2)

    return loss[0, 0], pi[:, :num_class]


def reference_forward(feats, y, gamma, beta, w, b, num_class):
    mean = jnp.mean(feats, axis=(0, 2, 3), keepdims=True)
    var = jnp.mean((feats - mean) ** 2, axis=(0, 2, 3), keepdims=True)
    xn = (feats - mean) / jnp.sqrt(var + EPS)
    xn = xn * gamma.reshape(1, -1, 1, 1) + beta.reshape(1, -1, 1, 1)
    pooled = jnp.mean(xn, axis=(2, 3))
    logits = pooled @ w + b
    logp = jax.nn.log_softmax(logits, axis=-1)
    loss = -jnp.mean(jnp.take_along_axis(logp, y[:, None], axis=-1))
    return loss, logits


if __name__ == "__main__":
    # Small shapes consistent with the module: one monitored conv layer with
    # out_channels=4, spatial 16x16, batch 2, num_class=10.
    N, C, H, W = 2, 4, 16, 16
    num_class = 10

    key = jax.random.PRNGKey(0)
    k_feat, k_w, k_b, k_y = jax.random.split(key, 4)

    feats = jax.random.normal(k_feat, (N, C, H, W), dtype=jnp.float32)
    y = jax.random.randint(k_y, (N,), 0, num_class, dtype=jnp.int32)

    # BatchNorm2d default affine params; Linear params (deterministic init).
    gamma = jnp.ones((C,), jnp.float32)
    beta = jnp.zeros((C,), jnp.float32)
    bound = 1.0 / jnp.sqrt(C)
    w_lin = jax.random.uniform(k_w, (C, num_class), jnp.float32, -bound, bound)
    b_lin = jax.random.uniform(k_b, (num_class,), jnp.float32, -bound, bound)

    loss, pi = dcp_classifier_forward(feats, y, gamma, beta, w_lin, b_lin, num_class)
    loss, pi = jax.block_until_ready((loss, pi))

    loss_ref, pi_ref = reference_forward(feats, y, gamma, beta, w_lin, b_lin, num_class)
    assert jnp.allclose(pi, pi_ref, atol=1e-4, rtol=1e-4), "logits mismatch"
    assert jnp.allclose(loss, loss_ref, atol=1e-4, rtol=1e-4), "loss mismatch"

    print("KERNEL_OK")
</pallas_src>

<mosaic_0001>
module attributes {stable_mosaic.version = 11 : i64} {
  func.func @dcp_kernel(%arg0: i32, %arg1: memref<2x4x128xf32, #tpu.memory_space<vmem>>, %arg2: memref<1x4xf32, #tpu.memory_space<vmem>>, %arg3: memref<1x4xf32, #tpu.memory_space<vmem>>, %arg4: memref<4x128xf32, #tpu.memory_space<vmem>>, %arg5: memref<1x128xf32, #tpu.memory_space<vmem>>, %arg6: memref<2x1xi32, #tpu.memory_space<vmem>>, %arg7: memref<1x1xf32, #tpu.memory_space<smem>>, %arg8: memref<2x128xf32, #tpu.memory_space<vmem>>, %arg9: memref<2x4xf32, #tpu.memory_space<vmem>>, %arg10: memref<2x4xf32, #tpu.memory_space<vmem>>) attributes {dimension_semantics = [#tpu.dimension_semantics<arbitrary>], iteration_bounds = array<i64: 2>, scalar_prefetch = 0 : i64, scratch_operands = 2 : i64, tpu.core_type = #tpu.core_type<tc>, window_params = [{transform_indices = @transform_0, window_bounds = array<i64: 2, 4, 128>}, {pipeline_mode = #tpu.pipeline_mode<synchronous>, transform_indices = @transform_1, window_bounds = array<i64: 1, 4>}, {pipeline_mode = #tpu.pipeline_mode<synchronous>, transform_indices = @transform_2, window_bounds = array<i64: 1, 4>}, {pipeline_mode = #tpu.pipeline_mode<synchronous>, transform_indices = @transform_3, window_bounds = array<i64: 4, 128>}, {pipeline_mode = #tpu.pipeline_mode<synchronous>, transform_indices = @transform_4, window_bounds = array<i64: 1, 128>}, {pipeline_mode = #tpu.pipeline_mode<synchronous>, transform_indices = @transform_5, window_bounds = array<i64: 2, 1>}, {transform_indices = @transform_6, window_bounds = array<i64: 1, 1>}, {pipeline_mode = #tpu.pipeline_mode<synchronous>, transform_indices = @transform_7, window_bounds = array<i64: 2, 128>}]} {
    %c0_i32 = arith.constant 0 : i32
    %0 = arith.cmpi eq, %arg0, %c0_i32 : i32
    %1 = arith.extui %0 : i1 to i32
    %c0_i32_0 = arith.constant 0 : i32
    %2 = arith.cmpi ne, %1, %c0_i32_0 : i32
    scf.if %2 {
      %cst_13 = arith.constant 0.000000e+00 : f32
      %16 = vector.broadcast %cst_13 : f32 to vector<2x4xf32>
      %c0_14 = arith.constant 0 : index
      %c0_15 = arith.constant 0 : index
      %17 = vector.load %arg9[%c0_14, %c0_15] : memref<2x4xf32, #tpu.memory_space<vmem>>, vector<2x4xf32>
      tpu.vector_store %arg9[%c0_14, %c0_15], %16 {strides = array<i32>} : memref<2x4xf32, #tpu.memory_space<vmem>>, vector<2x4xf32>,
      %cst_16 = arith.constant 0.000000e+00 : f32
      %18 = vector.broadcast %cst_16 : f32 to vector<2x4xf32>
      %c0_17 = arith.constant 0 : index
      %c0_18 = arith.constant 0 : index
      %19 = vector.load %arg10[%c0_17, %c0_18] : memref<2x4xf32, #tpu.memory_space<vmem>>, vector<2x4xf32>
      tpu.vector_store %arg10[%c0_17, %c0_18], %18 {strides = array<i32>} : memref<2x4xf32, #tpu.memory_space<vmem>>, vector<2x4xf32>,
    } else {
    }
    %c0 = arith.constant 0 : index
    %c0_1 = arith.constant 0 : index
    %c0_2 = arith.constant 0 : index
    %3 = vector.load %arg1[%c0, %c0_1, %c0_2] : memref<2x4x128xf32, #tpu.memory_space<vmem>>, vector<2x4x128xf32>
    %c0_3 = arith.constant 0 : index
    %c0_4 = arith.constant 0 : index
    %4 = vector.load %arg9[%c0_3, %c0_4] : memref<2x4xf32, #tpu.memory_space<vmem>>, vector<2x4xf32>
    %cst = arith.constant dense<0.000000e+00> : vector<2x4xf32>
    %5 = vector.multi_reduction <add>, %3, %cst [2] : vector<2x4x128xf32> to vector<2x4xf32>
    %6 = arith.addf %4, %5 : vector<2x4xf32>
    %c0_5 = arith.constant 0 : index
    %c0_6 = arith.constant 0 : index
    %7 = vector.load %arg9[%c0_5, %c0_6] : memref<2x4xf32, #tpu.memory_space<vmem>>, vector<2x4xf32>
    tpu.vector_store %arg9[%c0_5, %c0_6], %6 {strides = array<i32>} : memref<2x4xf32, #tpu.memory_space<vmem>>, vector<2x4xf32>,
    %c0_7 = arith.constant 0 : index
    %c0_8 = arith.constant 0 : index
    %8 = vector.load %arg10[%c0_7, %c0_8] : memref<2x4xf32, #tpu.memory_space<vmem>>, vector<2x4xf32>
    %9 = arith.mulf %3, %3 : vector<2x4x128xf32>
    %cst_9 = arith.constant dense<0.000000e+00> : vector<2x4xf32>
    %10 = vector.multi_reduction <add>, %9, %cst_9 [2] : vector<2x4x128xf32> to vector<2x4xf32>
    %11 = arith.addf %8, %10 : vector<2x4xf32>
    %c0_10 = arith.constant 0 : index
    %c0_11 = arith.constant 0 : index
    %12 = vector.load %arg10[%c0_10, %c0_11] : memref<2x4xf32, #tpu.memory_space<vmem>>, vector<2x4xf32>
    tpu.vector_store %arg10[%c0_10, %c0_11], %11 {strides = array<i32>} : memref<2x4xf32, #tpu.memory_space<vmem>>, vector<2x4xf32>,
    %c1_i32 = arith.constant 1 : i32
    %13 = arith.cmpi eq, %arg0, %c1_i32 : i32
    %14 = arith.extui %13 : i1 to i32
    %c0_i32_12 = arith.constant 0 : i32
    %15 = arith.cmpi ne, %14, %c0_i32_12 : i32
    scf.if %15 {
      %c0_13 = arith.constant 0 : index
      %c0_14 = arith.constant 0 : index
      %16 = vector.load %arg9[%c0_13, %c0_14] : memref<2x4xf32, #tpu.memory_space<vmem>>, vector<2x4xf32>
      %c0_15 = arith.constant 0 : index
      %c0_16 = arith.constant 0 : index
      %17 = vector.load %arg10[%c0_15, %c0_16] : memref<2x4xf32, #tpu.memory_space<vmem>>, vector<2x4xf32>
      %cst_17 = arith.constant 3.906250e-03 : f32
      %18 = vector.broadcast %cst_17 : f32 to vector<2x4xf32>
      %19 = arith.mulf %16, %18 : vector<2x4xf32>
      %cst_18 = arith.constant dense<0.000000e+00> : vector<4xf32>
      %20 = vector.multi_reduction <add>, %16, %cst_18 [0] : vector<2x4xf32> to vector<4xf32>
      %21 = vector.shape_cast %20 : vector<4xf32> to vector<1x4xf32>
      %cst_19 = arith.constant 0.001953125 : f32
      %22 = vector.broadcast %cst_19 : f32 to vector<1x4xf32>
      %23 = arith.mulf %21, %22 : vector<1x4xf32>
      %cst_20 = arith.constant dense<0.000000e+00> : vector<4xf32>
      %24 = vector.multi_reduction <add>, %17, %cst_20 [0] : vector<2x4xf32> to vector<4xf32>
      %25 = vector.shape_cast %24 : vector<4xf32> to vector<1x4xf32>
      %cst_21 = arith.constant 0.001953125 : f32
      %26 = vector.broadcast %cst_21 : f32 to vector<1x4xf32>
      %27 = arith.mulf %25, %26 : vector<1x4xf32>
      %28 = arith.mulf %23, %23 : vector<1x4xf32>
      %29 = arith.subf %27, %28 : vector<1x4xf32>
      %cst_22 = arith.constant 0.000000e+00 : f32
      %30 = vector.broadcast %cst_22 : f32 to vector<1x4xf32>
      %31 = arith.maximumf %29, %30 : vector<1x4xf32>
      %c0_23 = arith.constant 0 : index
      %c0_24 = arith.constant 0 : index
      %32 = vector.load %arg2[%c0_23, %c0_24] : memref<1x4xf32, #tpu.memory_space<vmem>>, vector<1x4xf32>
      %cst_25 = arith.constant 9.99999974E-6 : f32
      %33 = vector.broadcast %cst_25 : f32 to vector<1x4xf32>
      %34 = arith.addf %31, %33 : vector<1x4xf32>
      %35 = math.rsqrt %34 : vector<1x4xf32>
      %36 = arith.mulf %32, %35 : vector<1x4xf32>
      %c0_26 = arith.constant 0 : index
      %c0_27 = arith.constant 0 : index
      %37 = vector.load %arg3[%c0_26, %c0_27] : memref<1x4xf32, #tpu.memory_space<vmem>>, vector<1x4xf32>
      %38 = arith.mulf %36, %23 : vector<1x4xf32>
      %39 = arith.subf %37, %38 : vector<1x4xf32>
      %40 = vector.broadcast %36 : vector<1x4xf32> to vector<2x4xf32>
      %41 = arith.mulf %19, %40 : vector<2x4xf32>
      %42 = vector.broadcast %39 : vector<1x4xf32> to vector<2x4xf32>
      %43 = arith.addf %41, %42 : vector<2x4xf32>
      %c0_28 = arith.constant 0 : index
      %c0_29 = arith.constant 0 : index
      %44 = vector.load %arg4[%c0_28, %c0_29] : memref<4x128xf32, #tpu.memory_space<vmem>>, vector<4x128xf32>
      %cst_30 = arith.constant dense<0.000000e+00> : vector<2x128xf32>
      %45 = tpu.matmul %43, %44, %cst_30 {dimension_numbers = #tpu.dot_dimension_numbers<[1], [0], [0], [1], [0, 0, 1, 1], [], []>} : vector<2x4xf32>, vector<4x128xf32>, vector<2x128xf32> -> vector<2x128xf32>
      %c0_31 = arith.constant 0 : index
      %c0_32 = arith.constant 0 : index
      %46 = vector.load %arg5[%c0_31, %c0_32] : memref<1x128xf32, #tpu.memory_space<vmem>>, vector<1x128xf32>
      %47 = vector.broadcast %46 : vector<1x128xf32> to vector<2x128xf32>
      %48 = arith.addf %45, %47 : vector<2x128xf32>
      %c0_33 = arith.constant 0 : index
      %c0_34 = arith.constant 0 : index
      %49 = vector.load %arg8[%c0_33, %c0_34] : memref<2x128xf32, #tpu.memory_space<vmem>>, vector<2x128xf32>
      tpu.vector_store %arg8[%c0_33, %c0_34], %48 {strides = array<i32>} : memref<2x128xf32, #tpu.memory_space<vmem>>, vector<2x128xf32>,
      %50 = tpu.iota {dimensions = array<i32: 1>} : vector<2x128xi32>
      %c10_i32 = arith.constant 10 : i32
      %51 = vector.broadcast %c10_i32 : i32 to vector<2x128xi32>
      %52 = arith.cmpi slt, %50, %51 : vector<2x128xi32>
      %cst_35 = arith.constant -1.000000e+30 : f32
      %53 = vector.broadcast %cst_35 : f32 to vector<2x128xf32>
      %54 = arith.select %52, %48, %53 : vector<2x128xi1>, vector<2x128xf32>
      %cst_36 = arith.constant dense<0xFF800000> : vector<2xf32>
      %55 = vector.multi_reduction <maximumf>, %54, %cst_36 [1] : vector<2x128xf32> to vector<2xf32>
      %56 = vector.shape_cast %55 : vector<2xf32> to vector<2x1xf32>
      %57 = vector.broadcast %56 : vector<2x1xf32> to vector<2x128xf32>
      %58 = arith.subf %54, %57 : vector<2x128xf32>
      %59 = math.exp %58 : vector<2x128xf32>
      %cst_37 = arith.constant dense<0.000000e+00> : vector<2xf32>
      %60 = vector.multi_reduction <add>, %59, %cst_37 [1] : vector<2x128xf32> to vector<2xf32>
      %61 = vector.shape_cast %60 : vector<2xf32> to vector<2x1xf32>
      %62 = math.log %61 : vector<2x1xf32>
      %63 = vector.broadcast %62 : vector<2x1xf32> to vector<2x128xf32>
      %64 = arith.subf %58, %63 : vector<2x128xf32>
      %c0_38 = arith.constant 0 : index
      %c0_39 = arith.constant 0 : index
      %65 = vector.load %arg6[%c0_38, %c0_39] : memref<2x1xi32, #tpu.memory_space<vmem>>, vector<2x1xi32>
      %66 = vector.broadcast %65 : vector<2x1xi32> to vector<2x128xi32>
      %67 = arith.cmpi eq, %50, %66 : vector<2x128xi32>
      %68 = arith.extui %67 : vector<2x128xi1> to vector<2x128xi32>
      %69 = arith.sitofp %68 : vector<2x128xi32> to vector<2x128xf32>
      %70 = arith.mulf %69, %64 : vector<2x128xf32>
      %71 = vector.shape_cast %70 : vector<2x128xf32> to vector<1x2x128xf32>
      %cst_40 = arith.constant dense<0.000000e+00> : vector<1xf32>
      %72 = vector.multi_reduction <add>, %71, %cst_40 [1, 2] : vector<1x2x128xf32> to vector<1xf32>
      %73 = vector.shape_cast %72 : vector<1xf32> to vector<1x1x1xf32>
      %74 = vector.extract %73[0, 0, 0] : f32 from vector<1x1x1xf32>
      %cst_41 = arith.constant 0.000000e+00 : f32
      %75 = arith.subf %cst_41, %74 : f32
      %cst_42 = arith.constant 5.000000e-01 : f32
      %76 = arith.mulf %75, %cst_42 : f32
      %c0_43 = arith.constant 0 : index
      %c0_44 = arith.constant 0 : index
      %77 = memref.load %arg7[%c0_43, %c0_44] : memref<1x1xf32, #tpu.memory_space<smem>>
      memref.store %76, %arg7[%c0_43, %c0_44] : memref<1x1xf32, #tpu.memory_space<smem>>
    } else {
    }
    return
  }
  func.func @transform_0(%arg0: i32) -> (i32, i32, i32) {
    %c0_i32 = arith.constant 0 : i32
    %c0_i32_0 = arith.constant 0 : i32
    %c0_i32_1 = arith.constant 0 : i32
    return %c0_i32, %c0_i32_0, %arg0 : i32, i32, i32
  }
  func.func @transform_1(%arg0: i32) -> (i32, i32) {
    %c0_i32 = arith.constant 0 : i32
    %c0_i32_0 = arith.constant 0 : i32
    %c0_i32_1 = arith.constant 0 : i32
    return %c0_i32, %c0_i32_0 : i32, i32
  }
  func.func @transform_2(%arg0: i32) -> (i32, i32) {
    %c0_i32 = arith.constant 0 : i32
    %c0_i32_0 = arith.constant 0 : i32
    %c0_i32_1 = arith.constant 0 : i32
    return %c0_i32, %c0_i32_0 : i32, i32
  }
  func.func @transform_3(%arg0: i32) -> (i32, i32) {
    %c0_i32 = arith.constant 0 : i32
    %c0_i32_0 = arith.constant 0 : i32
    %c0_i32_1 = arith.constant 0 : i32
    return %c0_i32, %c0_i32_0 : i32, i32
  }
  func.func @transform_4(%arg0: i32) -> (i32, i32) {
    %c0_i32 = arith.constant 0 : i32
    %c0_i32_0 = arith.constant 0 : i32
    %c0_i32_1 = arith.constant 0 : i32
    return %c0_i32, %c0_i32_0 : i32, i32
  }
  func.func @transform_5(%arg0: i32) -> (i32, i32) {
    %c0_i32 = arith.constant 0 : i32
    %c0_i32_0 = arith.constant 0 : i32
    %c0_i32_1 = arith.constant 0 : i32
    return %c0_i32, %c0_i32_0 : i32, i32
  }
  func.func @transform_6(%arg0: i32) -> (i32, i32) {
    %c0_i32 = arith.constant 0 : i32
    %c0_i32_0 = arith.constant 0 : i32
    %c0_i32_1 = arith.constant 0 : i32
    return %c0_i32, %c0_i32_0 : i32, i32
  }
  func.func @transform_7(%arg0: i32) -> (i32, i32) {
    %c0_i32 = arith.constant 0 : i32
    %c0_i32_0 = arith.constant 0 : i32
    %c0_i32_1 = arith.constant 0 : i32
    return %c0_i32, %c0_i32_0 : i32, i32
  }
}

</mosaic_0001>

<llo_original>
// kernel: tpu_custom_call.1
$region0: #{tpu_custom_call.1}
  #allocation0 [shape = 'u32[]', space=smem, size = 0x4, offset = 0x4, fixed_abs, tag = 'smem constant byte address 0x4 - core index']
  #allocation1 [shape = 'u32[144,128]{1,0:T(1,128)}', space=vmem, size = 0x12000, scoped, tag = 'internal scratch']
  #allocation2 [shape = 'f32[2,4]{1,0:T(2,128)}', space=vmem, size = 0x400, scoped, tag = 'scratch operand']
  #allocation3 [shape = 'f32[2,4]{1,0:T(2,128)}', space=vmem, size = 0x400, scoped, tag = 'scratch operand']
  %s0 = inlined_call_operand.hbm [shape: f32[2,4,256], index: 0, kind: input, shape index: {}]
  %s1 = inlined_call_operand.vmem [shape: f32[1,4], index: 1, kind: input, shape index: {}]
  %s2 = inlined_call_operand.vmem [shape: f32[1,4], index: 2, kind: input, shape index: {}]
  %s3 = inlined_call_operand.vmem [shape: f32[4,128], index: 3, kind: input, shape index: {}]
  %s4 = inlined_call_operand.vmem [shape: f32[1,128], index: 4, kind: input, shape index: {}]
  %s5 = inlined_call_operand.vmem [shape: s32[2,1], index: 5, kind: input, shape index: {}]
  %s6 = inlined_call_operand.hbm [shape: f32[1,1], index: 6, kind: output, shape index: {0}]
  %s7 = inlined_call_operand.hbm [shape: f32[2,128], index: 7, kind: output, shape index: {1}]
  %8 = xla_tuple %s6, %s7
  %s9 = sld [smem:[#allocation0]]
  $region77: #{tpu_custom_call.1} parent=0
    _
  %s11 = ssub.s32 1, %s9
  %s12 = scalar_select 0, %s11, %s9
  $region1: #{tpu_custom_call.1} parent=0
    #allocation4 [shape = 'u8[8192]{0}', space=vmem, size = 0x2000, scoped, tag = 'input window, operand 0']
    #allocation5 [shape = 's32[2]{0}', space=sflag, size = 0x8, scoped, tag = 'scoped memory for tpu_custom_call.1']
    #allocation6 [shape = 's32[2]{0}', space=sflag, size = 0x8, scoped, tag = 'scoped memory for tpu_custom_call.1']
    #allocation7 [shape = 's32[2]{0}', space=sflag, size = 0x8, scoped, tag = 'scoped memory for tpu_custom_call.1']
    #allocation8 [shape = 'u8[512]{0}', space=smem, size = 0x200, scoped, tag = 'output window, operand 0, single buffered']
    #allocation9 [shape = 'u8[1024]{0}', space=vmem, size = 0x400, scoped, tag = 'output window, operand 1, single buffered']
    %13 = vsyncpa [#allocation5], 0
    %s14 = scalar_lea.sflag [#allocation5], 1
    %15 = vsyncpa %s14, 0
    %16 = vsyncpa [#allocation7], 0
    %17 = vsyncpa [#allocation6], 0
    loop: start=0, step=1, limit=4
    $region2: #{tpu_custom_call.1} parent=1 // loop_pre_header
      _
    $region3: #{tpu_custom_call.1} parent=1 // loop_header
      %s19 = sphi 0, %s23
      %p20 = scmp.ge.s32.totalorder %s19, 4
      %s29 = sphi 0, %s31
      %s32 = sphi 0, %s29
      %s33 = sphi 0, %s32
      %s49 = sphi 0, %s33
      %s53 = sphi 0, %s53
      %s55 = sphi 0, %s53
      %s56 = sphi 0, %s55
      %s70 = sphi 0, %s56
      %s74 = sphi 0, %s74
      %s76 = sphi 0, %s74
      %s77 = sphi 0, %s76
      %s91 = sphi 0, %s77
      %s95 = sphi 0, %s95
      %s97 = sphi 0, %s95
      %s98 = sphi 0, %s97
      %s112 = sphi 0, %s98
      %s116 = sphi 0, %s116
      %s118 = sphi 0, %s116
      %s119 = sphi 0, %s118
      %s133 = sphi 0, %s119
      %s137 = sphi 0, %s137
      %s139 = sphi 0, %s137
      %s140 = sphi 0, %s139
      %s154 = sphi 0, %s140
      %s158 = sphi 0, %s158
      %s160 = sphi 0, %s158
      %s161 = sphi 0, %s160
      %s175 = sphi 0, %s161
      %s179 = sphi 0, %s179
      %s181 = sphi 0, %s179
      %s182 = sphi 0, %s181
      %s196 = sphi 0, %s182
    $region4: #{tpu_custom_call.1} parent=1 // loop_header_branch
      %22 = sbr.rel (%p20) target = $region8
    $region5: #{tpu_custom_call.1} parent=1 // loop_body
      %s24 = ssub.s32 %s19, 1
      %s25 = ssub.s32 %s19, 2
      %s26 = sadd.s32 %s19, 1
      %s27 = ssub.s32 %s19, %s26
      %p28 = scmp.eq.s32.totalorder %s27, 0
      %s30 = sadd.s32 %s29, 1
      %s31 = scalar_select %p28, %s29, %s30
      %p34 = pneg %p28
      %p35 = scmp.eq.s32.totalorder %s19, 1
      %p36 = por %p34, %p35
      %p37 = scmp.ne.s32.totalorder %s29, %s32
      %p38 = scmp.eq.s32.totalorder %s19, 0
      %p39 = por %p37, %p38
      %p40 = scmp.ne.s32.totalorder %s29, %s32
      %p41 = scmp.eq.s32.totalorder %s24, 1
      %p42 = por %p40, %p41
      %p43 = scmp.ne.s32.totalorder %s32, %s33
      %p44 = scmp.eq.s32.totalorder %s24, 0
      %p45 = por %p43, %p44
      %p46 = scmp.ne.s32.totalorder %s32, %s33
      %p47 = scmp.eq.s32.totalorder %s25, 1
      %p48 = por %p46, %p47
      %p50 = scmp.ne.s32.totalorder %s33, %s49
      %p51 = scmp.eq.s32.totalorder %s25, 0
      %p52 = por %p50, %p51
      %s54 = sadd.s32 %s53, 1
      %p57 = scmp.eq.s32.totalorder %s19, 1
      %p58 = scmp.ne.s32.totalorder %s53, %s55
      %p59 = scmp.eq.s32.totalorder %s19, 0
      %p60 = por %p58, %p59
      %p61 = scmp.ne.s32.totalorder %s53, %s55
      %p62 = scmp.eq.s32.totalorder %s24, 1
      %p63 = por %p61, %p62
      %p64 = scmp.ne.s32.totalorder %s55, %s56
      %p65 = scmp.eq.s32.totalorder %s24, 0
      %p66 = por %p64, %p65
      %p67 = scmp.ne.s32.totalorder %s55, %s56
      %p68 = scmp.eq.s32.totalorder %s25, 1
      %p69 = por %p67, %p68
      %p71 = scmp.ne.s32.totalorder %s56, %s70
      %p72 = scmp.eq.s32.totalorder %s25, 0
      %p73 = por %p71, %p72
      %s75 = sadd.s32 %s74, 1
      %p78 = scmp.eq.s32.totalorder %s19, 1
      %p79 = scmp.ne.s32.totalorder %s74, %s76
      %p80 = scmp.eq.s32.totalorder %s19, 0
      %p81 = por %p79, %p80
      %p82 = scmp.ne.s32.totalorder %s74, %s76
      %p83 = scmp.eq.s32.totalorder %s24, 1
      %p84 = por %p82, %p83
      %p85 = scmp.ne.s32.totalorder %s76, %s77
      %p86 = scmp.eq.s32.totalorder %s24, 0
      %p87 = por %p85, %p86
      %p88 = scmp.ne.s32.totalorder %s76, %s77
      %p89 = scmp.eq.s32.totalorder %s25, 1
      %p90 = por %p88, %p89
      %p92 = scmp.ne.s32.totalorder %s77, %s91
      %p93 = scmp.eq.s32.totalorder %s25, 0
      %p94 = por %p92, %p93
      %s96 = sadd.s32 %s95, 1
      %p99 = scmp.eq.s32.totalorder %s19, 1
      %p100 = scmp.ne.s32.totalorder %s95, %s97
      %p101 = scmp.eq.s32.totalorder %s19, 0
      %p102 = por %p100, %p101
      %p103 = scmp.ne.s32.totalorder %s95, %s97
      %p104 = scmp.eq.s32.totalorder %s24, 1
      %p105 = por %p103, %p104
      %p106 = scmp.ne.s32.totalorder %s97, %s98
      %p107 = scmp.eq.s32.totalorder %s24, 0
      %p108 = por %p106, %p107
      %p109 = scmp.ne.s32.totalorder %s97, %s98
      %p110 = scmp.eq.s32.totalorder %s25, 1
      %p111 = por %p109, %p110
      %p113 = scmp.ne.s32.totalorder %s98, %s112
      %p114 = scmp.eq.s32.totalorder %s25, 0
      %p115 = por %p113, %p114
      %s117 = sadd.s32 %s116, 1
      %p120 = scmp.eq.s32.totalorder %s19, 1
      %p121 = scmp.ne.s32.totalorder %s116, %s118
      %p122 = scmp.eq.s32.totalorder %s19, 0
      %p123 = por %p121, %p122
      %p124 = scmp.ne.s32.totalorder %s116, %s118
      %p125 = scmp.eq.s32.totalorder %s24, 1
      %p126 = por %p124, %p125
      %p127 = scmp.ne.s32.totalorder %s118, %s119
      %p128 = scmp.eq.s32.totalorder %s24, 0
      %p129 = por %p127, %p128
      %p130 = scmp.ne.s32.totalorder %s118, %s119
      %p131 = scmp.eq.s32.totalorder %s25, 1
      %p132 = por %p130, %p131
      %p134 = scmp.ne.s32.totalorder %s119, %s133
      %p135 = scmp.eq.s32.totalorder %s25, 0
      %p136 = por %p134, %p135
      %s138 = sadd.s32 %s137, 1
      %p141 = scmp.eq.s32.totalorder %s19, 1
      %p142 = scmp.ne.s32.totalorder %s137, %s139
      %p143 = scmp.eq.s32.totalorder %s19, 0
      %p144 = por %p142, %p143
      %p145 = scmp.ne.s32.totalorder %s137, %s139
      %p146 = scmp.eq.s32.totalorder %s24, 1
      %p147 = por %p145, %p146
      %p148 = scmp.ne.s32.totalorder %s139, %s140
      %p149 = scmp.eq.s32.totalorder %s24, 0
      %p150 = por %p148, %p149
      %p151 = scmp.ne.s32.totalorder %s139, %s140
      %p152 = scmp.eq.s32.totalorder %s25, 1
      %p153 = por %p151, %p152
      %p155 = scmp.ne.s32.totalorder %s140, %s154
      %p156 = scmp.eq.s32.totalorder %s25, 0
      %p157 = por %p155, %p156
      %s159 = sadd.s32 %s158, 1
      %p162 = scmp.eq.s32.totalorder %s19, 1
      %p163 = scmp.ne.s32.totalorder %s158, %s160
      %p164 = scmp.eq.s32.totalorder %s19, 0
      %p165 = por %p163, %p164
      %p166 = scmp.ne.s32.totalorder %s158, %s160
      %p167 = scmp.eq.s32.totalorder %s24, 1
      %p168 = por %p166, %p167
      %p169 = scmp.ne.s32.totalorder %s160, %s161
      %p170 = scmp.eq.s32.totalorder %s24, 0
      %p171 = por %p169, %p170
      %p172 = scmp.ne.s32.totalorder %s160, %s161
      %p173 = scmp.eq.s32.totalorder %s25, 1
      %p174 = por %p172, %p173
      %p176 = scmp.ne.s32.totalorder %s161, %s175
      %p177 = scmp.eq.s32.totalorder %s25, 0
      %p178 = por %p176, %p177
      %s180 = sadd.s32 %s179, 1
      %p183 = scmp.eq.s32.totalorder %s19, 1
      %p184 = scmp.ne.s32.totalorder %s179, %s181
      %p185 = scmp.eq.s32.totalorder %s19, 0
      %p186 = por %p184, %p185
      %p187 = scmp.ne.s32.totalorder %s179, %s181
      %p188 = scmp.eq.s32.totalorder %s24, 1
      %p189 = por %p187, %p188
      %p190 = scmp.ne.s32.totalorder %s181, %s182
      %p191 = scmp.eq.s32.totalorder %s24, 0
      %p192 = por %p190, %p191
      %p193 = scmp.ne.s32.totalorder %s181, %s182
      %p194 = scmp.eq.s32.totalorder %s25, 1
      %p195 = por %p193, %p194
      %p197 = scmp.ne.s32.totalorder %s182, %s196
      %p198 = scmp.eq.s32.totalorder %s25, 0
      %p199 = por %p197, %p198
      %p200 = scmp.le.s32.totalorder 1, %s19
      %p201 = scmp.lt.s32.totalorder %s19, 3
      %p202 = pnand %p200, %p201
      %p203 = pneg %p202
      // Predicated region
      $region9: #{tpu_custom_call.1} parent=5 // pred_check
        _
      $region10: #{tpu_custom_call.1} parent=5 // pred_check_branch
        %205 = sbr.rel (%p202) target = $region12
      $region11: #{tpu_custom_call.1} parent=5 // pred_region
        %s206 = ssub.s32 %s19, 1
        // Predicated region
        $region13: #{tpu_custom_call.1} parent=11 // pred_check
          %p207 = pneg %p66
        $region14: #{tpu_custom_call.1} parent=11 // pred_check_branch
          %209 = sbr.rel (%p207) target = $region16
        $region15: #{tpu_custom_call.1} parent=11 // pred_region
          _
        $region16: #{tpu_custom_call.1} parent=11 // pred_fallthru
          _
        // Predicated region
        $region17: #{tpu_custom_call.1} parent=11 // pred_check
          %p210 = pneg %p87
        $region18: #{tpu_custom_call.1} parent=11 // pred_check_branch
          %212 = sbr.rel (%p210) target = $region20
        $region19: #{tpu_custom_call.1} parent=11 // pred_region
          _
        $region20: #{tpu_custom_call.1} parent=11 // pred_fallthru
          _
        // Predicated region
        $region21: #{tpu_custom_call.1} parent=11 // pred_check
          %p213 = pneg %p108
        $region22: #{tpu_custom_call.1} parent=11 // pred_check_branch
          %215 = sbr.rel (%p213) target = $region24
        $region23: #{tpu_custom_call.1} parent=11 // pred_region
          _
        $region24: #{tpu_custom_call.1} parent=11 // pred_fallthru
          _
        // Predicated region
        $region25: #{tpu_custom_call.1} parent=11 // pred_check
          %p216 = pneg %p129
        $region26: #{tpu_custom_call.1} parent=11 // pred_check_branch
          %218 = sbr.rel (%p216) target = $region28
        $region27: #{tpu_custom_call.1} parent=11 // pred_region
          _
        $region28: #{tpu_custom_call.1} parent=11 // pred_fallthru
          _
        // Predicated region
        $region29: #{tpu_custom_call.1} parent=11 // pred_check
          %p219 = pneg %p150
        $region30: #{tpu_custom_call.1} parent=11 // pred_check_branch
          %221 = sbr.rel (%p219) target = $region32
        $region31: #{tpu_custom_call.1} parent=11 // pred_region
          _
        $region32: #{tpu_custom_call.1} parent=11 // pred_fallthru
          _
      $region12: #{tpu_custom_call.1} parent=5 // pred_fallthru
        _
      %p222 = scmp.lt.s32.totalorder %s19, 2
      // Predicated region
      $region33: #{tpu_custom_call.1} parent=5 // pred_check
        %p223 = pneg %p222
      $region34: #{tpu_custom_call.1} parent=5 // pred_check_branch
        %225 = sbr.rel (%p223) target = $region36
      $region35: #{tpu_custom_call.1} parent=5 // pred_region
        // Predicated region
        $region37: #{tpu_custom_call.1} parent=35 // pred_check
          %p226 = pneg %p39
        $region38: #{tpu_custom_call.1} parent=35 // pred_check_branch
          %228 = sbr.rel (%p226) target = $region40
        $region39: #{tpu_custom_call.1} parent=35 // pred_region
          %s229 = sand.u32 %s29, 1
          %s230 = scalar_lea.sflag [#allocation5], %s229
          %s231 = sand.u32 %s29, 1
          %s232 = smul.addr %s231, 8
          %s233 = scalar_lea.vmem [#allocation4], %s232
          %s235 = ssub.s32 128, 128
          %236 = vsyncadd %s230, %s235
          %s237 = smul.addr %s19, 64
          %s238 = scalar_lea.hbm %s0, %s237
          %s239 = sshll.u32 %s233, 4
          %s240 = int_to_ptr.vmem [resolvable:$true] %s239
          %245 = dma.hbm_to_vmem [thread:$0]  %s238, 128, %s240, %s230, 128, 64, 4
        $region40: #{tpu_custom_call.1} parent=35 // pred_fallthru
          _
      $region36: #{tpu_custom_call.1} parent=5 // pred_fallthru
        _
      %p246 = scmp.le.s32.totalorder 1, %s19
      %p247 = scmp.lt.s32.totalorder %s19, 3
      %p248 = pnand %p246, %p247
      %p249 = pneg %p248
      // Predicated region
      $region41: #{tpu_custom_call.1} parent=5 // pred_check
        _
      $region42: #{tpu_custom_call.1} parent=5 // pred_check_branch
        %251 = sbr.rel (%p248) target = $region44
      $region43: #{tpu_custom_call.1} parent=5 // pred_region
        %s252 = ssub.s32 %s19, 1
        %s253 = sand.u32 %s32, 1
        %s254 = scalar_lea.sflag [#allocation5], %s253
        %s255 = sand.u32 %s32, 1
        %s256 = smul.addr %s255, 8
        %s257 = scalar_lea.vmem [#allocation4], %s256
        // Predicated region
        $region45: #{tpu_custom_call.1} parent=43 // pred_check
          %p258 = pneg %p45
        $region46: #{tpu_custom_call.1} parent=43 // pred_check_branch
          %260 = sbr.rel (%p258) target = $region48
        $region47: #{tpu_custom_call.1} parent=43 // pred_region
          %261 = dma.done %s254, 128
        $region48: #{tpu_custom_call.1} parent=43 // pred_fallthru
          _
        %s262 = sand.u32 %s32, 1
        %s263 = scalar_lea.sflag [#allocation5], %s262
        %s264 = sand.u32 %s32, 1
        %s265 = smul.addr %s264, 8
        %s266 = scalar_lea.vmem [#allocation4], %s265
        %p267 = pneg %p45
        %p268 = pneg %p42
        %p269 = pneg %p66
        %p270 = pneg %p63
        %p271 = pneg %p87
        %p272 = pneg %p84
        %p273 = pneg %p108
        %p274 = pneg %p105
        %p275 = pneg %p129
        %p276 = pneg %p126
        %p277 = pneg %p150
        %p278 = pneg %p147
        %p279 = pneg %p171
        %p280 = pneg %p168
        %p281 = pneg %p192
        %p282 = pneg %p189
        %p283 = scmp.eq.s32.totalorder %s24, 0
        // Predicated region
        $region49: #{tpu_custom_call.1} parent=43 // pred_check
          %p284 = pneg %p283
        $region50: #{tpu_custom_call.1} parent=43 // pred_check_branch
          %286 = sbr.rel (%p284) target = $region52
        $region51: #{tpu_custom_call.1} parent=43 // pred_region
          %vm287 = vcmask 25600
          %288 = vst.msk [vmem:[#allocation2] sm:$0x3] %vm287, 0.0
          %289 = vst.msk [vmem:[#allocation3] sm:$0x3] %vm287, 0.0
        $region52: #{tpu_custom_call.1} parent=43 // pred_fallthru
          _
        %v290 = vld [vmem:[%s257] sm:$0xf]
        %v291 = vld [vmem:[%s257 + $0x4] sm:$0xf]
        %v292 = vld [vmem:[#allocation2] sm:$0x3]
        %vm293 = vcmask 1043456
        %v294 = vsel %vm293, %v290, 0.0
        %295 = vadd.xlane.f32.xlu0 %v294
        %v296 = vpop.xlane.xlu0 %295
        %v297 = vsel %vm293, %v291, 0.0
        %298 = vadd.xlane.f32.xlu0 %v297
        %v299 = vpop.xlane.xlu0 %298
        %v302 = vlaneseq
        %v303 = vand.u32 %v302, 127
        %v304 = vlaneseq
        %v305 = vshrl.u32 %v304, 7
        %v306 = vsub.s32 %v303, %v305
        %v307 = vrot.slane %v296, %v306
        %v308 = vlaneseq
        %v309 = vshrl.u32 %v308, 7
        %v310 = vsub.s32 %v303, %v309
        %v311 = vrot.slane %v299, %v310
        %vm312 = vcmask 1041409
        %v313 = vsel %vm312, %v311, %v307
        %v315 = vadd.f32 %v292, %v313
        %vm316 = vcmask 25600
        %317 = vst.msk [vmem:[#allocation2] sm:$0x3] %vm316, %v315
        %v318 = vld [vmem:[#allocation3] sm:$0x3]
        %v319 = vmul.f32 %v290, %v290
        %v320 = vmul.f32 %v291, %v291
        %v321 = vsel %vm293, %v319, 0.0
        %322 = vadd.xlane.f32.xlu0 %v321
        %v323 = vpop.xlane.xlu0 %322
        %v324 = vsel %vm293, %v320, 0.0
        %325 = vadd.xlane.f32.xlu0 %v324
        %v326 = vpop.xlane.xlu0 %325
        %v329 = vlaneseq
        %v330 = vshrl.u32 %v329, 7
        %v331 = vsub.s32 %v303, %v330
        %v332 = vrot.slane %v323, %v331
        %v333 = vlaneseq
        %v334 = vshrl.u32 %v333, 7
        %v335 = vsub.s32 %v303, %v334
        %v336 = vrot.slane %v326, %v335
        %v337 = vsel %vm312, %v336, %v332
        %v339 = vadd.f32 %v318, %v337
        %340 = vst.msk [vmem:[#allocation3] sm:$0x3] %vm316, %v339
        %p341 = scmp.eq.s32.totalorder %s24, 1
        // Predicated region
        $region53: #{tpu_custom_call.1} parent=43 // pred_check
          %p342 = pneg %p341
        $region54: #{tpu_custom_call.1} parent=43 // pred_check_branch
          %344 = sbr.rel (%p342) target = $region56
        $region55: #{tpu_custom_call.1} parent=43 // pred_region
          %v345 = vld [vmem:[#allocation2] sm:$0x3]
          %v346 = vld [vmem:[#allocation3] sm:$0x3]
          %v347 = vmul.f32 %v345, 0.00390625
          %v348 = vsel %vm316, %v345, 0.0
          %v349 = vrot.slane %v348, 4
          %v350 = vadd.f32 %v348, %v349
          %v351 = vrot.slane %v350, 2
          %v352 = vadd.f32 %v350, %v351
          %v353 = vrot.slane %v352, 1
          %v354 = vadd.f32 %v352, %v353
          %v355 = vmul.f32 %v354, 0.001953125
          %v356 = vsel %vm316, %v346, 0.0
          %v357 = vrot.slane %v356, 4
          %v358 = vadd.f32 %v356, %v357
          %v359 = vrot.slane %v358, 2
          %v360 = vadd.f32 %v358, %v359
          %v361 = vrot.slane %v360, 1
          %v362 = vadd.f32 %v360, %v361
          %v363 = vmul.f32 %v362, 0.001953125
          %v364 = vmul.f32 %v355, %v355
          %v365 = vsub.f32 %v363, %v364
          %v366 = vmax.f32 %v365, 0.0
          %v367 = vld [vmem:[%s1] sm:$0x1]
          %v368 = vadd.f32 %v366, 1e-05
          %v369 = vrsqrt.pop %v368
          %v370 = vmul.f32 %v367, %v369
          %v371 = vld [vmem:[%s2] sm:$0x1]
          %v372 = vmul.f32 %v370, %v355
          %v373 = vsub.f32 %v371, %v372
          %v375 = vlaneseq
          %v376 = vshrl.u32 %v375, 7
          %v377 = vsub.s32 0, %v376
          %v378 = vrot.slane %v370, %v377
          %v380 = vmul.f32 %v347, %v378
          %v382 = vlaneseq
          %v383 = vshrl.u32 %v382, 7
          %v384 = vsub.s32 0, %v383
          %v385 = vrot.slane %v373, %v384
          %v387 = vadd.f32 %v380, %v385
          %v388 = vld [vmem:[%s3] sm:$0xf]
          %v389 = vld [vmem:[%s4] sm:$0x1]
          %v391 = vlaneseq
          %v392 = vshrl.u32 %v391, 7
          %v393 = vsub.s32 0, %v392
          %v394 = vrot.slane %v389, %v393
          %vm396 = vcmask 31744
          %v398 = vsel %vm396, %v387, 0
          %v401 = vsel %vm293, %v388, 0
          %403 = vmatprep.subr.mxu0 0.0
          %404 = vmatpush1.msra.mxu0 %v401
          %405 = vmatprep.subr.mxu0 0.0
          %406 = vmatpush1.msra.mxu0 0.0
          %407 = vmatprep.subr.mxu0 0.0
          %408 = vmatpush1.msra.mxu0 0.0
          %409 = vmatprep.subr.mxu0 0.0
          %410 = vmatpush1.msra.mxu0 0.0
          %411 = vmatprep.subr.mxu0 0.0
          %412 = vmatpush1.msra.mxu0 0.0
          %413 = vmatprep.subr.mxu0 0.0
          %414 = vmatpush1.msra.mxu0 0.0
          %415 = vmatprep.subr.mxu0 0.0
          %416 = vmatpush1.msra.mxu0 0.0
          %417 = vmatprep.subr.mxu0 0.0
          %418 = vmatpush1.msra.mxu0 0.0
          %419 = vmatprep.subr.mxu0 0.0
          %420 = vmatpush1.msra.mxu0 0.0
          %421 = vmatprep.subr.mxu0 0.0
          %422 = vmatpush1.msra.mxu0 0.0
          %423 = vmatprep.subr.mxu0 0.0
          %424 = vmatpush1.msra.mxu0 0.0
          %425 = vmatprep.subr.mxu0 0.0
          %426 = vmatpush1.msra.mxu0 0.0
          %427 = vmatprep.subr.mxu0 0.0
          %428 = vmatpush1.msra.mxu0 0.0
          %429 = vmatprep.subr.mxu0 0.0
          %430 = vmatpush1.msra.mxu0 0.0
          %431 = vmatprep.subr.mxu0 0.0
          %432 = vmatpush1.msra.mxu0 0.0
          %433 = vmatprep.subr.mxu0 0.0
          %434 = vmatpush1.msra.mxu0 0.0
          %435 = vmatprep.subr.mxu0 0.0
          %436 = vmatpush1.msra.mxu0 0.0
          %437 = vmatprep.subr.mxu0 0.0
          %438 = vmatpush1.msra.mxu0 0.0
          %439 = vmatprep.subr.mxu0 0.0
          %440 = vmatpush1.msra.mxu0 0.0
          %441 = vmatprep.subr.mxu0 0.0
          %442 = vmatpush1.msra.mxu0 0.0
          %443 = vmatprep.subr.mxu0 0.0
          %444 = vmatpush1.msra.mxu0 0.0
          %445 = vmatprep.subr.mxu0 0.0
          %446 = vmatpush1.msra.mxu0 0.0
          %447 = vmatprep.subr.mxu0 0.0
          %448 = vmatpush1.msra.mxu0 0.0
          %449 = vmatprep.subr.mxu0 0.0
          %450 = vmatpush1.msra.mxu0 0.0
          %451 = vmatprep.subr.mxu0 0.0
          %452 = vmatpush1.msra.mxu0 0.0
          %453 = vmatprep.subr.mxu0 0.0
          %454 = vmatpush1.msra.mxu0 0.0
          %455 = vmatprep.subr.mxu0 0.0
          %456 = vmatpush1.msra.mxu0 0.0
          %457 = vmatprep.subr.mxu0 0.0
          %458 = vmatpush1.msra.mxu0 0.0
          %459 = vmatprep.subr.mxu0 0.0
          %460 = vmatpush1.msra.mxu0 0.0
          %461 = vmatprep.subr.mxu0 0.0
          %462 = vmatpush1.msra.mxu0 0.0
          %463 = vmatprep.subr.mxu0 0.0
          %464 = vmatpush1.msra.mxu0 0.0
          %465 = vmatprep.subr.mxu0 0.0
          %466 = vmatpush1.msra.mxu0 0.0
          %467 = vmatprep.mubr.f32.mxu0 0.0
          %468 = vmatmul.mubr.f32.gmra.mrb[0].mxu0 %v398
          %v469 = vpop.f32.mrb[0].mxu0
          %v470 = vadd.f32 %v394, %v469
          %v471 = vpop.f32.mrb[0].mxu0
          %472 = vdwg.mxu0
          %473 = vst [vmem:[#allocation9] sm:$0x3] %v470
          %vm474 = vcmp.lt.s32.totalorder %v303, 10
          %v475 = vsel %vm474, %v470, -1e+30
          %vm476 = vcmask 1041408
          %v477 = vsel %vm476, %v475, -inf
          %478 = vmax.xlane.f32.xlu0 %v477
          %v479 = vpop.xlane.xlu0 %478
          %v480 = vsub.f32 %v475, %v479
          %v481 = vmul.f32 %v480, 1.442695
          %v482 = vpow.pop %v481
          %v483 = vsel %vm476, %v482, 0.0
          %484 = vadd.xlane.f32.xlu0 %v483
          %v485 = vpop.xlane.xlu0 %484
          %v486 = vlog2.pop %v485
          %v487 = vmul.f32 %v486, 0.6931472
          %v488 = vsub.f32 %v480, %v487
          %v489 = vld [vmem:[%s5] sm:$0x3]
          %490 = vset.pattern.permute.xlu0 0
          %491 = vperm.xlu0 %490, %v489
          %v492 = vpop.permute.xlu0 %491
          %vm493 = vcmp.eq.s32.totalorder %v303, %v492
          %v494 = vsel %vm493, 1, 0
          %v495 = vcvt.s32.f32 %v494
          %v496 = vmul.f32 %v495, %v488
          %v497 = vsel %vm476, %v496, 0.0
          %498 = vadd.xlane.f32.xlu0 %v497
          %v499 = vpop.xlane.xlu0 %498
          %v500 = vrot.slane %v499, 4
          %v501 = vadd.f32 %v499, %v500
          %v502 = vrot.slane %v501, 2
          %v503 = vadd.f32 %v501, %v502
          %v504 = vrot.slane %v503, 1
          %v505 = vadd.f32 %v503, %v504
          %s506 = vtos %v505
          %s507 = ssub.f32 0.0, %s506
          %s508 = smul.f32 %s507, 0.5
          %s509 = scalar_lea.smem [#allocation8], 0
          %510 = sst [smem:[%s509]] %s508
        $region56: #{tpu_custom_call.1} parent=43 // pred_fallthru
          _
        // Predicated region
        $region57: #{tpu_custom_call.1} parent=43 // pred_check
          %p511 = pneg %p168
        $region58: #{tpu_custom_call.1} parent=43 // pred_check_branch
          %513 = sbr.rel (%p511) target = $region60
        $region59: #{tpu_custom_call.1} parent=43 // pred_region
          %s515 = ssub.s32 16, 16
          %516 = vsyncadd [#allocation7], %s515
          %519 = dma.smem_to_hbm [#allocation8], 16, %s6, [#allocation7]
        $region60: #{tpu_custom_call.1} parent=43 // pred_fallthru
          _
        // Predicated region
        $region61: #{tpu_custom_call.1} parent=43 // pred_check
          %p520 = pneg %p189
        $region62: #{tpu_custom_call.1} parent=43 // pred_check_branch
          %522 = sbr.rel (%p520) target = $region64
        $region63: #{tpu_custom_call.1} parent=43 // pred_region
          %s524 = ssub.s32 32, 32
          %525 = vsyncadd [#allocation6], %s524
          %s527 = sshll.u32 [#allocation9], 4
          %s528 = int_to_ptr.vmem [resolvable:$true] %s527
          %530 = dma.vmem_to_hbm [thread:$0]  %s528, 32, %s7, [#allocation6]
        $region64: #{tpu_custom_call.1} parent=43 // pred_fallthru
          _
        // Predicated region
        $region65: #{tpu_custom_call.1} parent=43 // pred_check
          %p531 = pneg %p168
        $region66: #{tpu_custom_call.1} parent=43 // pred_check_branch
          %533 = sbr.rel (%p531) target = $region68
        $region67: #{tpu_custom_call.1} parent=43 // pred_region
          %534 = dma.done [#allocation7], 16
        $region68: #{tpu_custom_call.1} parent=43 // pred_fallthru
          _
        // Predicated region
        $region69: #{tpu_custom_call.1} parent=43 // pred_check
          %p535 = pneg %p189
        $region70: #{tpu_custom_call.1} parent=43 // pred_check_branch
          %537 = sbr.rel (%p535) target = $region72
        $region71: #{tpu_custom_call.1} parent=43 // pred_region
          %538 = dma.done [#allocation6], 32
        $region72: #{tpu_custom_call.1} parent=43 // pred_fallthru
          _
        %539 = sfence
      $region44: #{tpu_custom_call.1} parent=5 // pred_fallthru
        _
      %p540 = scmp.le.s32.totalorder 2, %s19
      // Predicated region
      $region73: #{tpu_custom_call.1} parent=5 // pred_check
        %p541 = pneg %p540
      $region74: #{tpu_custom_call.1} parent=5 // pred_check_branch
        %543 = sbr.rel (%p541) target = $region76
      $region75: #{tpu_custom_call.1} parent=5 // pred_region
        %s544 = ssub.s32 %s19, 2
      $region76: #{tpu_custom_call.1} parent=5 // pred_fallthru
        _
    $region6: #{tpu_custom_call.1} parent=1 // loop_footer
      %s23 = sadd.s32 1, %s19
    $region7: #{tpu_custom_call.1} parent=1 // loop_footer_branch
      %18 = sbr.rel target = $region3
    $region8: #{tpu_custom_call.1} parent=1 // loop_exit
      _
    %545 = vsyncpa [#allocation5], 1
    %s546 = scalar_lea.sflag [#allocation5], 1
    %547 = vsyncpa %s546, 1
    %548 = vsyncpa [#allocation6], 1
    %s549 = scalar_lea.sflag [#allocation6], 1
    %550 = vsyncpa %s549, 1
    %551 = vsyncpa [#allocation7], 1
    %s552 = scalar_lea.sflag [#allocation7], 1
    %553 = vsyncpa %s552, 1

</llo_original>
